<compile_context>
chip_gen: v7x
topology: tpu7x:2x2x1
jax: 0.10.0
libtpu: 0.0.40
codegen_flags: <defaults>
</compile_context>

<pallas_src>
import numpy as np

import jax
import jax.numpy as jnp
from jax import lax
from jax.experimental import pallas as pl
from jax.experimental.pallas import tpu as pltpu

# CombinedLoss hyper-parameters (match the PyTorch module defaults).
ALPHA, BETA, GAMMA = 0.05, 0.9, 0.05
DATA_RANGE = 1.0
K1, K2 = 0.01, 0.03
C1 = (K1 * DATA_RANGE) ** 2
C2 = (K2 * DATA_RANGE) ** 2
WIN_SIZE = 11
WIN_SIGMA = 1.5
LANE_TARGET = 256          # target lane width per block (MXU width on v6e/v7x)


def _cdiv(a, b):
  return -(-a // b)


# ---------------------------------------------------------------------------
# Host-side constant builders (float64 intermediates -> float32; exact integer
# phase reduction (j*k) mod n so large H/W do not corrupt the DFT matrices).
# ---------------------------------------------------------------------------
def _dft_full(n):
  """Full n-point DFT matrices: C[j,k]=cos(2*pi*j*k/n), S[j,k]=sin(...)."""
  jk = np.outer(np.arange(n, dtype=np.int64), np.arange(n, dtype=np.int64)) % n
  ang = 2.0 * np.pi * jk.astype(np.float64) / float(n)
  return np.cos(ang).astype(np.float32), np.sin(ang).astype(np.float32)


def _rdft_weighted(n):
  """Half-spectrum DFT matrices (n, n//2+1) with conjugate-symmetry column
  weights (1, 2, ..., 2, [1 if n even]) folded in, so the weighted |.| sums
  over these columns equal the sums over the full spectrum (exact)."""
  nh = n // 2 + 1
  jk = np.outer(np.arange(n, dtype=np.int64),
                np.arange(nh, dtype=np.int64)) % n
  ang = 2.0 * np.pi * jk.astype(np.float64) / float(n)
  w = np.full((nh,), 2.0, dtype=np.float64)
  w[0] = 1.0
  if n % 2 == 0:
    w[-1] = 1.0
  return ((np.cos(ang) * w).astype(np.float32),
          (np.sin(ang) * w).astype(np.float32))


def _gauss_band(size, win=WIN_SIZE, sigma=WIN_SIGMA):
  """(size-win+1, size) band matrix = 'valid' 1-D Gaussian filter
  (pytorch_msssim-style window)."""
  coords = np.arange(win, dtype=np.float64) - (win // 2)
  g = np.exp(-(coords ** 2) / (2.0 * sigma ** 2))
  g = g / g.sum()
  out = size - win + 1
  band = np.zeros((out, size), dtype=np.float64)
  for o in range(out):
    band[o, o:o + win] = g
  return band.astype(np.float32)


def _block_diag(block, reps, row_pad=None):
  """Block-diagonal replication; optional zero-padding of each row block."""
  r, c = block.shape
  rp = r if row_pad is None else row_pad
  out = np.zeros((reps * rp, reps * c), dtype=block.dtype)
  for i in range(reps):
    out[i * rp:i * rp + r, i * c:(i + 1) * c] = block
  return out


# ---------------------------------------------------------------------------
# Kernel
# ---------------------------------------------------------------------------
def _make_kernel(H, Hout, Hpad):
  def kernel(x_ref, y_ref, cw_ref, sw_ref, ch2_ref, sh2_ref,
             gwt_ref, gh5_ref, l1_ref, fft_ref, ssim_ref):
    x = x_ref[0]                      # (H, TB*W)  batch folded into lanes
    y = y_ref[0]

    # ---- L1 partial sum -------------------------------------------------
    l1_sum = jnp.sum(jnp.abs(x - y))

    # ---- FFT-L1: half-spectrum DFT via matmuls (weights folded in) ------
    xy = jnp.concatenate([x, y], axis=0)                        # (2H, TB*W)
    yr = jnp.dot(xy, cw_ref[...], preferred_element_type=jnp.float32)
    yi = -jnp.dot(xy, sw_ref[...], preferred_element_type=jnp.float32)
    ch2 = ch2_ref[...]
    sh2 = sh2_ref[...]
    zr = (jnp.dot(ch2, yr, preferred_element_type=jnp.float32)
          + jnp.dot(sh2, yi, preferred_element_type=jnp.float32))
    zi = (jnp.dot(ch2, yi, preferred_element_type=jnp.float32)
          - jnp.dot(sh2, yr, preferred_element_type=jnp.float32))
    mag = jnp.sqrt(zr * zr + zi * zi)                           # (2H, TB*Wh)
    fft_sum = jnp.sum(jnp.abs(mag[:H] - mag[H:]))

    # ---- SSIM: valid separable Gaussian filter, 5 inputs in 2 matmuls ---
    a5 = jnp.concatenate([x, y, x * x, y * y, x * y], axis=0)   # (5H, TB*W)
    r5 = jnp.dot(a5, gwt_ref[...],
                 preferred_element_type=jnp.float32)            # (5H, TB*Wout)
    l5 = jnp.dot(gh5_ref[...], r5,
                 preferred_element_type=jnp.float32)            # (5*Hpad, TB*Wout)
    mu1 = l5[:Hpad]
    mu2 = l5[Hpad:2 * Hpad]
    exx = l5[2 * Hpad:3 * Hpad]
    eyy = l5[3 * Hpad:4 * Hpad]
    exy = l5[4 * Hpad:5 * Hpad]
    mu1_sq = mu1 * mu1
    mu2_sq = mu2 * mu2
    mu1_mu2 = mu1 * mu2
    s1 = exx - mu1_sq
    s2 = eyy - mu2_sq
    s12 = exy - mu1_mu2
    # single quotient == pytorch_msssim's ssim_map = lum * cs, fewer divides
    num = (2.0 * mu1_mu2 + C1) * (2.0 * s12 + C2)
    den = (mu1_sq + mu2_sq + C1) * (s1 + s2 + C2)
    ssim_map = num / den                                        # (Hpad, TB*Wout)
    if Hpad > Hout:   # mask zero-padded filter rows (they evaluate to 1.0)
      rows = lax.broadcasted_iota(jnp.int32, ssim_map.shape, 0)
      ssim_map = jnp.where(rows < Hout, ssim_map, 0.0)
    ssim_sum = jnp.sum(ssim_map)

    l1_ref[...] = jnp.full((1, 1, 1), l1_sum, dtype=jnp.float32)
    fft_ref[...] = jnp.full((1, 1, 1), fft_sum, dtype=jnp.float32)
    ssim_ref[...] = jnp.full((1, 1, 1), ssim_sum, dtype=jnp.float32)

  return kernel


# ---------------------------------------------------------------------------
# Wrapper
# ---------------------------------------------------------------------------
def combined_loss(pred, target, alpha=ALPHA, beta=BETA, gamma=GAMMA):
  assert pred.shape == target.shape
  B, C, H, W = pred.shape
  assert C == 1, "SSIM was configured with channel=1"
  assert H >= WIN_SIZE and W >= WIN_SIZE
  N = B * C
  Hout, Wout = H - WIN_SIZE + 1, W - WIN_SIZE + 1
  Hpad = _cdiv(Hout, 8) * 8
  Wh = W // 2 + 1

  # --- batch geometry: TB images per grid step, batch folded into lanes ----
  tb_cap = max(1, LANE_TARGET // W)
  nblk = _cdiv(N, tb_cap)
  TB = _cdiv(N, nblk)                 # balanced -> minimal zero padding
  n_pad = nblk * TB - N

  p = pred.reshape(N, H, W).astype(jnp.float32)
  t = target.reshape(N, H, W).astype(jnp.float32)
  if n_pad:
    zpad = jnp.zeros((n_pad, H, W), jnp.float32)
    p = jnp.concatenate([p, zpad], axis=0)
    t = jnp.concatenate([t, zpad], axis=0)
  # (nblk*TB, H, W) -> (nblk, H, TB*W): lane-dense blocks (layout plumbing
  # done in the wrapper so the kernel output/compute is lane-dense).
  p = p.reshape(nblk, TB, H, W).transpose(0, 2, 1, 3).reshape(nblk, H, TB * W)
  t = t.reshape(nblk, TB, H, W).transpose(0, 2, 1, 3).reshape(nblk, H, TB * W)

  # --- constants (host numpy, exact) ---------------------------------------
  CH, SH = _dft_full(H)                            # (H, H)
  CWr, SWr = _rdft_weighted(W)                     # (W, Wh), weights folded in
  GH = _gauss_band(H)                              # (Hout, H)
  GWT = _gauss_band(W).T                           # (W, Wout)

  cw_bd = jnp.asarray(_block_diag(CWr, TB))                  # (TB*W, TB*Wh)
  sw_bd = jnp.asarray(_block_diag(SWr, TB))                  # (TB*W, TB*Wh)
  ch2 = jnp.asarray(_block_diag(CH, 2))                      # (2H, 2H)
  sh2 = jnp.asarray(_block_diag(SH, 2))                      # (2H, 2H)
  gwt_bd = jnp.asarray(_block_diag(GWT, TB))                 # (TB*W, TB*Wout)
  gh5 = jnp.asarray(_block_diag(GH, 5, row_pad=Hpad))        # (5*Hpad, 5*H)

  # --- VMEM budget: 2 pipelined input blocks x 2 buffers + constants + temps.
  blk_bytes = H * TB * W * 4
  const_bytes = 4 * (cw_bd.size + sw_bd.size + ch2.size + sh2.size
                     + gwt_bd.size + gh5.size)
  interm_bytes = 4 * (12 * H * TB * W + 8 * H * TB * Wh + 10 * Hpad * TB * Wout)
  vmem_limit = int(min(max(2 * (4 * blk_bytes + 2 * const_bytes + interm_bytes),
                           16 * 2 ** 20),
                       64 * 2 ** 20))              # <= 64 MiB: safe on v7x too

  def const_spec(a):
    # Constant index_map -> block stays resident across the whole grid.
    # (For very large H/W these could also be single-buffered.)
    return pl.BlockSpec(a.shape, lambda n: (0, 0))

  kernel = _make_kernel(H, Hout, Hpad)
  out_l1, out_fft, out_ssim = pl.pallas_call(
      kernel,
      out_shape=(jax.ShapeDtypeStruct((nblk, 1, 1), jnp.float32),
                 jax.ShapeDtypeStruct((nblk, 1, 1), jnp.float32),
                 jax.ShapeDtypeStruct((nblk, 1, 1), jnp.float32)),
      grid_spec=pltpu.PrefetchScalarGridSpec(
          num_scalar_prefetch=0,
          grid=(nblk,),
          in_specs=[
              pl.BlockSpec((1, H, TB * W), lambda n: (n, 0, 0)),  # pred block
              pl.BlockSpec((1, H, TB * W), lambda n: (n, 0, 0)),  # target block
              const_spec(cw_bd), const_spec(sw_bd),
              const_spec(ch2), const_spec(sh2),
              const_spec(gwt_bd), const_spec(gh5),
          ],
          out_specs=[
              pl.BlockSpec((1, 1, 1), lambda n: (n, 0, 0)),
              pl.BlockSpec((1, 1, 1), lambda n: (n, 0, 0)),
              pl.BlockSpec((1, 1, 1), lambda n: (n, 0, 0)),
          ]),
      compiler_params=pltpu.CompilerParams(
          dimension_semantics=("parallel",),   # independent blocks -> megacore
          vmem_limit_bytes=vmem_limit),
  )(p, t, cw_bd, sw_bd, ch2, sh2, gwt_bd, gh5)

  n_pix = float(N * H * W)
  n_ssim = float(N * Hout * Wout)
  l1 = jnp.sum(out_l1) / n_pix
  fft_l1 = jnp.sum(out_fft) / n_pix
  # zero-padded images contribute exactly Hout*Wout each to the SSIM sum.
  ssim_val = (jnp.sum(out_ssim) - float(n_pad * Hout * Wout)) / n_ssim
  return alpha * l1 + beta * (1.0 - ssim_val) + gamma * fft_l1


if __name__ == "__main__":
  key = jax.random.PRNGKey(0)
  k1, k2 = jax.random.split(key)
  # SSIM(channel=1) => single-channel images; small NCHW shapes.
  pred = jax.random.uniform(k1, (2, 1, 16, 16), dtype=jnp.float32)
  target = jax.random.uniform(k2, (2, 1, 16, 16), dtype=jnp.float32)

  loss = jax.jit(combined_loss)(pred, target)
  jax.block_until_ready(loss)
  print("KERNEL_OK")
</pallas_src>

<mosaic_0001>
module attributes {stable_mosaic.version = 11 : i64} {
  func.func @kernel(%arg0: i32, %arg1: memref<1x16x32xf32, #tpu.memory_space<vmem>>, %arg2: memref<1x16x32xf32, #tpu.memory_space<vmem>>, %arg3: memref<32x18xf32, #tpu.memory_space<vmem>>, %arg4: memref<32x18xf32, #tpu.memory_space<vmem>>, %arg5: memref<32x32xf32, #tpu.memory_space<vmem>>, %arg6: memref<32x32xf32, #tpu.memory_space<vmem>>, %arg7: memref<32x12xf32, #tpu.memory_space<vmem>>, %arg8: memref<40x80xf32, #tpu.memory_space<vmem>>, %arg9: memref<1x1x1xf32, #tpu.memory_space<vmem>>, %arg10: memref<1x1x1xf32, #tpu.memory_space<vmem>>, %arg11: memref<1x1x1xf32, #tpu.memory_space<vmem>>) attributes {dimension_semantics = [#tpu.dimension_semantics<parallel>], iteration_bounds = array<i64: 1>, scalar_prefetch = 0 : i64, scratch_operands = 0 : i64, tpu.core_type = #tpu.core_type<tc>, window_params = [{transform_indices = @transform_0, window_bounds = array<i64: 1, 16, 32>}, {transform_indices = @transform_1, window_bounds = array<i64: 1, 16, 32>}, {pipeline_mode = #tpu.pipeline_mode<synchronous>, transform_indices = @transform_2, window_bounds = array<i64: 32, 18>}, {pipeline_mode = #tpu.pipeline_mode<synchronous>, transform_indices = @transform_3, window_bounds = array<i64: 32, 18>}, {pipeline_mode = #tpu.pipeline_mode<synchronous>, transform_indices = @transform_4, window_bounds = array<i64: 32, 32>}, {pipeline_mode = #tpu.pipeline_mode<synchronous>, transform_indices = @transform_5, window_bounds = array<i64: 32, 32>}, {pipeline_mode = #tpu.pipeline_mode<synchronous>, transform_indices = @transform_6, window_bounds = array<i64: 32, 12>}, {pipeline_mode = #tpu.pipeline_mode<synchronous>, transform_indices = @transform_7, window_bounds = array<i64: 40, 80>}, {transform_indices = @transform_8, window_bounds = array<i64: 1, 1, 1>}, {transform_indices = @transform_9, window_bounds = array<i64: 1, 1, 1>}, {transform_indices = @transform_10, window_bounds = array<i64: 1, 1, 1>}]} {
    %c0 = arith.constant 0 : index
    %c0_0 = arith.constant 0 : index
    %c0_1 = arith.constant 0 : index
    %0 = vector.load %arg1[%c0, %c0_0, %c0_1] : memref<1x16x32xf32, #tpu.memory_space<vmem>>, vector<1x16x32xf32>
    %1 = vector.shape_cast %0 : vector<1x16x32xf32> to vector<16x32xf32>
    %c0_2 = arith.constant 0 : index
    %c0_3 = arith.constant 0 : index
    %c0_4 = arith.constant 0 : index
    %2 = vector.load %arg2[%c0_2, %c0_3, %c0_4] : memref<1x16x32xf32, #tpu.memory_space<vmem>>, vector<1x16x32xf32>
    %3 = vector.shape_cast %2 : vector<1x16x32xf32> to vector<16x32xf32>
    %4 = arith.subf %1, %3 : vector<16x32xf32>
    %5 = math.absf %4 : vector<16x32xf32>
    %6 = vector.shape_cast %5 : vector<16x32xf32> to vector<1x16x32xf32>
    %cst = arith.constant dense<0.000000e+00> : vector<1xf32>
    %7 = vector.multi_reduction <add>, %6, %cst [1, 2] : vector<1x16x32xf32> to vector<1xf32>
    %8 = vector.shape_cast %7 : vector<1xf32> to vector<1x1x1xf32>
    %9 = vector.extract %8[0, 0, 0] : f32 from vector<1x1x1xf32>
    %10 = tpu.concatenate %1, %3 in 0 : vector<16x32xf32>, vector<16x32xf32> -> vector<32x32xf32>
    %c0_5 = arith.constant 0 : index
    %c0_6 = arith.constant 0 : index
    %11 = vector.load %arg3[%c0_5, %c0_6] : memref<32x18xf32, #tpu.memory_space<vmem>>, vector<32x18xf32>
    %cst_7 = arith.constant dense<0.000000e+00> : vector<32x18xf32>
    %12 = tpu.matmul %10, %11, %cst_7 {dimension_numbers = #tpu.dot_dimension_numbers<[1], [0], [0], [1], [0, 0, 1, 1], [], []>} : vector<32x32xf32>, vector<32x18xf32>, vector<32x18xf32> -> vector<32x18xf32>
    %c0_8 = arith.constant 0 : index
    %c0_9 = arith.constant 0 : index
    %13 = vector.load %arg4[%c0_8, %c0_9] : memref<32x18xf32, #tpu.memory_space<vmem>>, vector<32x18xf32>
    %cst_10 = arith.constant dense<0.000000e+00> : vector<32x18xf32>
    %14 = tpu.matmul %10, %13, %cst_10 {dimension_numbers = #tpu.dot_dimension_numbers<[1], [0], [0], [1], [0, 0, 1, 1], [], []>} : vector<32x32xf32>, vector<32x18xf32>, vector<32x18xf32> -> vector<32x18xf32>
    %cst_11 = arith.constant 0.000000e+00 : f32
    %15 = vector.broadcast %cst_11 : f32 to vector<32x18xf32>
    %16 = arith.subf %15, %14 : vector<32x18xf32>
    %c0_12 = arith.constant 0 : index
    %c0_13 = arith.constant 0 : index
    %17 = vector.load %arg5[%c0_12, %c0_13] : memref<32x32xf32, #tpu.memory_space<vmem>>, vector<32x32xf32>
    %c0_14 = arith.constant 0 : index
    %c0_15 = arith.constant 0 : index
    %18 = vector.load %arg6[%c0_14, %c0_15] : memref<32x32xf32, #tpu.memory_space<vmem>>, vector<32x32xf32>
    %cst_16 = arith.constant dense<0.000000e+00> : vector<32x18xf32>
    %19 = tpu.matmul %17, %12, %cst_16 {dimension_numbers = #tpu.dot_dimension_numbers<[1], [0], [0], [1], [0, 0, 1, 1], [], []>} : vector<32x32xf32>, vector<32x18xf32>, vector<32x18xf32> -> vector<32x18xf32>
    %cst_17 = arith.constant dense<0.000000e+00> : vector<32x18xf32>
    %20 = tpu.matmul %18, %16, %cst_17 {dimension_numbers = #tpu.dot_dimension_numbers<[1], [0], [0], [1], [0, 0, 1, 1], [], []>} : vector<32x32xf32>, vector<32x18xf32>, vector<32x18xf32> -> vector<32x18xf32>
    %21 = arith.addf %19, %20 : vector<32x18xf32>
    %cst_18 = arith.constant dense<0.000000e+00> : vector<32x18xf32>
    %22 = tpu.matmul %17, %16, %cst_18 {dimension_numbers = #tpu.dot_dimension_numbers<[1], [0], [0], [1], [0, 0, 1, 1], [], []>} : vector<32x32xf32>, vector<32x18xf32>, vector<32x18xf32> -> vector<32x18xf32>
    %cst_19 = arith.constant dense<0.000000e+00> : vector<32x18xf32>
    %23 = tpu.matmul %18, %12, %cst_19 {dimension_numbers = #tpu.dot_dimension_numbers<[1], [0], [0], [1], [0, 0, 1, 1], [], []>} : vector<32x32xf32>, vector<32x18xf32>, vector<32x18xf32> -> vector<32x18xf32>
    %24 = arith.subf %22, %23 : vector<32x18xf32>
    %25 = arith.mulf %21, %21 : vector<32x18xf32>
    %26 = arith.mulf %24, %24 : vector<32x18xf32>
    %27 = arith.addf %25, %26 : vector<32x18xf32>
    %28 = math.sqrt %27 : vector<32x18xf32>
    %29 = vector.extract_strided_slice %28 {offsets = [0, 0], sizes = [16, 18], strides = [1, 1]} : vector<32x18xf32> to vector<16x18xf32>
    %30 = vector.extract_strided_slice %28 {offsets = [16, 0], sizes = [16, 18], strides = [1, 1]} : vector<32x18xf32> to vector<16x18xf32>
    %31 = arith.subf %29, %30 : vector<16x18xf32>
    %32 = math.absf %31 : vector<16x18xf32>
    %33 = vector.shape_cast %32 : vector<16x18xf32> to vector<1x16x18xf32>
    %cst_20 = arith.constant dense<0.000000e+00> : vector<1xf32>
    %34 = vector.multi_reduction <add>, %33, %cst_20 [1, 2] : vector<1x16x18xf32> to vector<1xf32>
    %35 = vector.shape_cast %34 : vector<1xf32> to vector<1x1x1xf32>
    %36 = vector.extract %35[0, 0, 0] : f32 from vector<1x1x1xf32>
    %37 = arith.mulf %1, %1 : vector<16x32xf32>
    %38 = arith.mulf %3, %3 : vector<16x32xf32>
    %39 = arith.mulf %1, %3 : vector<16x32xf32>
    %40 = tpu.concatenate %1, %3, %37, %38, %39 in 0 : vector<16x32xf32>, vector<16x32xf32>, vector<16x32xf32>, vector<16x32xf32>, vector<16x32xf32> -> vector<80x32xf32>
    %c0_21 = arith.constant 0 : index
    %c0_22 = arith.constant 0 : index
    %41 = vector.load %arg7[%c0_21, %c0_22] : memref<32x12xf32, #tpu.memory_space<vmem>>, vector<32x12xf32>
    %cst_23 = arith.constant dense<0.000000e+00> : vector<80x12xf32>
    %42 = tpu.matmul %40, %41, %cst_23 {dimension_numbers = #tpu.dot_dimension_numbers<[1], [0], [0], [1], [0, 0, 1, 1], [], []>} : vector<80x32xf32>, vector<32x12xf32>, vector<80x12xf32> -> vector<80x12xf32>
    %c0_24 = arith.constant 0 : index
    %c0_25 = arith.constant 0 : index
    %43 = vector.load %arg8[%c0_24, %c0_25] : memref<40x80xf32, #tpu.memory_space<vmem>>, vector<40x80xf32>
    %cst_26 = arith.constant dense<0.000000e+00> : vector<40x12xf32>
    %44 = tpu.matmul %43, %42, %cst_26 {dimension_numbers = #tpu.dot_dimension_numbers<[1], [0], [0], [1], [0, 0, 1, 1], [], []>} : vector<40x80xf32>, vector<80x12xf32>, vector<40x12xf32> -> vector<40x12xf32>
    %45 = vector.extract_strided_slice %44 {offsets = [0, 0], sizes = [8, 12], strides = [1, 1]} : vector<40x12xf32> to vector<8x12xf32>
    %46 = vector.extract_strided_slice %44 {offsets = [8, 0], sizes = [8, 12], strides = [1, 1]} : vector<40x12xf32> to vector<8x12xf32>
    %47 = vector.extract_strided_slice %44 {offsets = [16, 0], sizes = [8, 12], strides = [1, 1]} : vector<40x12xf32> to vector<8x12xf32>
    %48 = vector.extract_strided_slice %44 {offsets = [24, 0], sizes = [8, 12], strides = [1, 1]} : vector<40x12xf32> to vector<8x12xf32>
    %49 = vector.extract_strided_slice %44 {offsets = [32, 0], sizes = [8, 12], strides = [1, 1]} : vector<40x12xf32> to vector<8x12xf32>
    %50 = arith.mulf %45, %45 : vector<8x12xf32>
    %51 = arith.mulf %46, %46 : vector<8x12xf32>
    %52 = arith.mulf %45, %46 : vector<8x12xf32>
    %53 = arith.subf %47, %50 : vector<8x12xf32>
    %54 = arith.subf %48, %51 : vector<8x12xf32>
    %55 = arith.subf %49, %52 : vector<8x12xf32>
    %cst_27 = arith.constant 2.000000e+00 : f32
    %56 = vector.broadcast %cst_27 : f32 to vector<8x12xf32>
    %57 = arith.mulf %56, %52 : vector<8x12xf32>
    %cst_28 = arith.constant 9.99999974E-5 : f32
    %58 = vector.broadcast %cst_28 : f32 to vector<8x12xf32>
    %59 = arith.addf %57, %58 : vector<8x12xf32>
    %cst_29 = arith.constant 2.000000e+00 : f32
    %60 = vector.broadcast %cst_29 : f32 to vector<8x12xf32>
    %61 = arith.mulf %60, %55 : vector<8x12xf32>
    %cst_30 = arith.constant 8.99999984E-4 : f32
    %62 = vector.broadcast %cst_30 : f32 to vector<8x12xf32>
    %63 = arith.addf %61, %62 : vector<8x12xf32>
    %64 = arith.mulf %59, %63 : vector<8x12xf32>
    %65 = arith.addf %50, %51 : vector<8x12xf32>
    %cst_31 = arith.constant 9.99999974E-5 : f32
    %66 = vector.broadcast %cst_31 : f32 to vector<8x12xf32>
    %67 = arith.addf %65, %66 : vector<8x12xf32>
    %68 = arith.addf %53, %54 : vector<8x12xf32>
    %cst_32 = arith.constant 8.99999984E-4 : f32
    %69 = vector.broadcast %cst_32 : f32 to vector<8x12xf32>
    %70 = arith.addf %68, %69 : vector<8x12xf32>
    %71 = arith.mulf %67, %70 : vector<8x12xf32>
    %72 = arith.divf %64, %71 : vector<8x12xf32>
    %73 = tpu.iota {dimensions = array<i32: 0>} : vector<8x12xi32>
    %c6_i32 = arith.constant 6 : i32
    %74 = vector.broadcast %c6_i32 : i32 to vector<8x12xi32>
    %75 = arith.cmpi slt, %73, %74 : vector<8x12xi32>
    %cst_33 = arith.constant 0.000000e+00 : f32
    %76 = vector.broadcast %cst_33 : f32 to vector<8x12xf32>
    %77 = arith.select %75, %72, %76 : vector<8x12xi1>, vector<8x12xf32>
    %78 = vector.shape_cast %77 : vector<8x12xf32> to vector<1x8x12xf32>
    %cst_34 = arith.constant dense<0.000000e+00> : vector<1xf32>
    %79 = vector.multi_reduction <add>, %78, %cst_34 [1, 2] : vector<1x8x12xf32> to vector<1xf32>
    %80 = vector.shape_cast %79 : vector<1xf32> to vector<1x1x1xf32>
    %81 = vector.extract %80[0, 0, 0] : f32 from vector<1x1x1xf32>
    %82 = vector.broadcast %9 : f32 to vector<1x1x1xf32>
    %c0_35 = arith.constant 0 : index
    %c0_36 = arith.constant 0 : index
    %c0_37 = arith.constant 0 : index
    %83 = vector.load %arg9[%c0_35, %c0_36, %c0_37] : memref<1x1x1xf32, #tpu.memory_space<vmem>>, vector<1x1x1xf32>
    tpu.vector_store %arg9[%c0_35, %c0_36, %c0_37], %82 {strides = array<i32>} : memref<1x1x1xf32, #tpu.memory_space<vmem>>, vector<1x1x1xf32>,
    %84 = vector.broadcast %36 : f32 to vector<1x1x1xf32>
    %c0_38 = arith.constant 0 : index
    %c0_39 = arith.constant 0 : index
    %c0_40 = arith.constant 0 : index
    %85 = vector.load %arg10[%c0_38, %c0_39, %c0_40] : memref<1x1x1xf32, #tpu.memory_space<vmem>>, vector<1x1x1xf32>
    tpu.vector_store %arg10[%c0_38, %c0_39, %c0_40], %84 {strides = array<i32>} : memref<1x1x1xf32, #tpu.memory_space<vmem>>, vector<1x1x1xf32>,
    %86 = vector.broadcast %81 : f32 to vector<1x1x1xf32>
    %c0_41 = arith.constant 0 : index
    %c0_42 = arith.constant 0 : index
    %c0_43 = arith.constant 0 : index
    %87 = vector.load %arg11[%c0_41, %c0_42, %c0_43] : memref<1x1x1xf32, #tpu.memory_space<vmem>>, vector<1x1x1xf32>
    tpu.vector_store %arg11[%c0_41, %c0_42, %c0_43], %86 {strides = array<i32>} : memref<1x1x1xf32, #tpu.memory_space<vmem>>, vector<1x1x1xf32>,
    return
  }
  func.func @transform_0(%arg0: i32) -> (i32, i32, i32) {
    %c0_i32 = arith.constant 0 : i32
    %c0_i32_0 = arith.constant 0 : i32
    %c0_i32_1 = arith.constant 0 : i32
    return %arg0, %c0_i32, %c0_i32_0 : i32, i32, i32
  }
  func.func @transform_1(%arg0: i32) -> (i32, i32, i32) {
    %c0_i32 = arith.constant 0 : i32
    %c0_i32_0 = arith.constant 0 : i32
    %c0_i32_1 = arith.constant 0 : i32
    return %arg0, %c0_i32, %c0_i32_0 : i32, i32, i32
  }
  func.func @transform_2(%arg0: i32) -> (i32, i32) {
    %c0_i32 = arith.constant 0 : i32
    %c0_i32_0 = arith.constant 0 : i32
    %c0_i32_1 = arith.constant 0 : i32
    return %c0_i32, %c0_i32_0 : i32, i32
  }
  func.func @transform_3(%arg0: i32) -> (i32, i32) {
    %c0_i32 = arith.constant 0 : i32
    %c0_i32_0 = arith.constant 0 : i32
    %c0_i32_1 = arith.constant 0 : i32
    return %c0_i32, %c0_i32_0 : i32, i32
  }
  func.func @transform_4(%arg0: i32) -> (i32, i32) {
    %c0_i32 = arith.constant 0 : i32
    %c0_i32_0 = arith.constant 0 : i32
    %c0_i32_1 = arith.constant 0 : i32
    return %c0_i32, %c0_i32_0 : i32, i32
  }
  func.func @transform_5(%arg0: i32) -> (i32, i32) {
    %c0_i32 = arith.constant 0 : i32
    %c0_i32_0 = arith.constant 0 : i32
    %c0_i32_1 = arith.constant 0 : i32
    return %c0_i32, %c0_i32_0 : i32, i32
  }
  func.func @transform_6(%arg0: i32) -> (i32, i32) {
    %c0_i32 = arith.constant 0 : i32
    %c0_i32_0 = arith.constant 0 : i32
    %c0_i32_1 = arith.constant 0 : i32
    return %c0_i32, %c0_i32_0 : i32, i32
  }
  func.func @transform_7(%arg0: i32) -> (i32, i32) {
    %c0_i32 = arith.constant 0 : i32
    %c0_i32_0 = arith.constant 0 : i32
    %c0_i32_1 = arith.constant 0 : i32
    return %c0_i32, %c0_i32_0 : i32, i32
  }
  func.func @transform_8(%arg0: i32) -> (i32, i32, i32) {
    %c0_i32 = arith.constant 0 : i32
    %c0_i32_0 = arith.constant 0 : i32
    %c0_i32_1 = arith.constant 0 : i32
    return %arg0, %c0_i32, %c0_i32_0 : i32, i32, i32
  }
  func.func @transform_9(%arg0: i32) -> (i32, i32, i32) {
    %c0_i32 = arith.constant 0 : i32
    %c0_i32_0 = arith.constant 0 : i32
    %c0_i32_1 = arith.constant 0 : i32
    return %arg0, %c0_i32, %c0_i32_0 : i32, i32, i32
  }
  func.func @transform_10(%arg0: i32) -> (i32, i32, i32) {
    %c0_i32 = arith.constant 0 : i32
    %c0_i32_0 = arith.constant 0 : i32
    %c0_i32_1 = arith.constant 0 : i32
    return %arg0, %c0_i32, %c0_i32_0 : i32, i32, i32
  }
}

</mosaic_0001>

<llo_original>
// kernel: combined_loss.1
$region0: #{combined_loss.1}
  #allocation0 [shape = 'u32[]', space=smem, size = 0x4, offset = 0x4, fixed_abs, tag = 'smem constant byte address 0x4 - core index']
  #allocation1 [shape = 'u32[144,128]{1,0:T(1,128)}', space=vmem, size = 0x12000, scoped, tag = 'internal scratch']
  %s0 = inlined_call_operand.vmem [shape: f32[1,16,32], index: 0, kind: input, shape index: {}]
  %s1 = inlined_call_operand.vmem [shape: f32[1,16,32], index: 1, kind: input, shape index: {}]
  %s2 = inlined_call_operand.vmem [shape: f32[32,18], index: 2, kind: input, shape index: {}]
  %s3 = inlined_call_operand.vmem [shape: f32[32,18], index: 3, kind: input, shape index: {}]
  %s4 = inlined_call_operand.vmem [shape: f32[32,32], index: 4, kind: input, shape index: {}]
  %s5 = inlined_call_operand.vmem [shape: f32[32,32], index: 5, kind: input, shape index: {}]
  %s6 = inlined_call_operand.vmem [shape: f32[32,12], index: 6, kind: input, shape index: {}]
  %s7 = inlined_call_operand.vmem [shape: f32[40,80], index: 7, kind: input, shape index: {}]
  %s8 = inlined_call_operand.hbm [shape: f32[1,1,1], index: 8, kind: output, shape index: {0}]
  %s9 = inlined_call_operand.hbm [shape: f32[1,1,1], index: 9, kind: output, shape index: {1}]
  %s10 = inlined_call_operand.hbm [shape: f32[1,1,1], index: 10, kind: output, shape index: {2}]
  %11 = xla_tuple %s8, %s9, %s10
  %s12 = sld [smem:[#allocation0]]
  $region58: #{combined_loss.1} parent=0
    _
  %s14 = ssub.s32 1, %s12
  %s15 = scalar_select 0, %s14, %s12
  $region1: #{combined_loss.1} parent=0
    #allocation2 [shape = 'u8[512]{0}', space=vmem, size = 0x400, scoped, tag = 'output window, operand 0, single buffered']
    #allocation3 [shape = 's32[1]{0}', space=sflag, size = 0x4, scoped, tag = 'scoped memory for combined_loss.1']
    #allocation4 [shape = 'u8[512]{0}', space=vmem, size = 0x400, scoped, tag = 'output window, operand 1, single buffered']
    #allocation5 [shape = 's32[1]{0}', space=sflag, size = 0x4, scoped, tag = 'scoped memory for combined_loss.1']
    #allocation6 [shape = 'u8[512]{0}', space=vmem, size = 0x400, scoped, tag = 'output window, operand 2, single buffered']
    %16 = vsyncpa [#allocation3], 0
    %17 = vsyncpa [#allocation5], 0
    // Predicated region
    $region2: #{combined_loss.1} parent=1 // pred_check
      _
    $region3: #{combined_loss.1} parent=1 // pred_check_branch
      %19 = sbr.rel (0) target = $region5
    $region4: #{combined_loss.1} parent=1 // pred_region
      _
    $region5: #{combined_loss.1} parent=1 // pred_fallthru
      _
    // Predicated region
    $region6: #{combined_loss.1} parent=1 // pred_check
      _
    $region7: #{combined_loss.1} parent=1 // pred_check_branch
      %21 = sbr.rel (0) target = $region9
    $region8: #{combined_loss.1} parent=1 // pred_region
      _
    $region9: #{combined_loss.1} parent=1 // pred_fallthru
      _
    // Predicated region
    $region10: #{combined_loss.1} parent=1 // pred_check
      _
    $region11: #{combined_loss.1} parent=1 // pred_check_branch
      %23 = sbr.rel (0) target = $region13
    $region12: #{combined_loss.1} parent=1 // pred_region
      _
    $region13: #{combined_loss.1} parent=1 // pred_fallthru
      _
    // Predicated region
    $region14: #{combined_loss.1} parent=1 // pred_check
      _
    $region15: #{combined_loss.1} parent=1 // pred_check_branch
      %25 = sbr.rel (0) target = $region17
    $region16: #{combined_loss.1} parent=1 // pred_region
      _
    $region17: #{combined_loss.1} parent=1 // pred_fallthru
      _
    // Predicated region
    $region18: #{combined_loss.1} parent=1 // pred_check
      _
    $region19: #{combined_loss.1} parent=1 // pred_check_branch
      %27 = sbr.rel (0) target = $region21
    $region20: #{combined_loss.1} parent=1 // pred_region
      _
    $region21: #{combined_loss.1} parent=1 // pred_fallthru
      _
    // Predicated region
    $region22: #{combined_loss.1} parent=1 // pred_check
      _
    $region23: #{combined_loss.1} parent=1 // pred_check_branch
      %29 = sbr.rel (0) target = $region25
    $region24: #{combined_loss.1} parent=1 // pred_region
      _
    $region25: #{combined_loss.1} parent=1 // pred_fallthru
      _
    // Predicated region
    $region26: #{combined_loss.1} parent=1 // pred_check
      _
    $region27: #{combined_loss.1} parent=1 // pred_check_branch
      %31 = sbr.rel (0) target = $region29
    $region28: #{combined_loss.1} parent=1 // pred_region
      _
    $region29: #{combined_loss.1} parent=1 // pred_fallthru
      _
    // Predicated region
    $region30: #{combined_loss.1} parent=1 // pred_check
      _
    $region31: #{combined_loss.1} parent=1 // pred_check_branch
      %33 = sbr.rel (0) target = $region33
    $region32: #{combined_loss.1} parent=1 // pred_region
      _
    $region33: #{combined_loss.1} parent=1 // pred_fallthru
      _
    %v34 = vld [vmem:[%s0] sm:$0xff]
    %v35 = vld [vmem:[%s0 + $0x8] sm:$0xff]
    %v36 = vld [vmem:[%s1] sm:$0xff]
    %v37 = vld [vmem:[%s1 + $0x8] sm:$0xff]
    %v38 = vsub.f32 %v34, %v36
    %v39 = vsub.f32 %v35, %v37
    %v40 = vand.u32 2147483647, %v38
    %v41 = vand.u32 2147483647, %v39
    %vm42 = vcmask 261120
    %v43 = vsel %vm42, %v40, 0.0
    %v44 = vsel %vm42, %v41, 0.0
    %v45 = vadd.f32 %v43, %v44
    %46 = vadd.xlane.f32.xlu0 %v45
    %v47 = vpop.xlane.xlu0 %46
    %v48 = vrot.slane %v47, 4
    %v49 = vadd.f32 %v47, %v48
    %v50 = vrot.slane %v49, 2
    %v51 = vadd.f32 %v49, %v50
    %v52 = vrot.slane %v51, 1
    %v53 = vadd.f32 %v51, %v52
    %s54 = vtos %v53
    %v55 = vld [vmem:[%s2] sm:$0xff]
    %v56 = vld [vmem:[%s2 + $0x8] sm:$0xff]
    %v57 = vld [vmem:[%s2 + $0x10] sm:$0xff]
    %v58 = vld [vmem:[%s2 + $0x18] sm:$0xff]
    %v60 = vsel %vm42, %v34, 0
    %v63 = vsel %vm42, %v35, 0
    %v66 = vsel %vm42, %v36, 0
    %v69 = vsel %vm42, %v37, 0
    %71 = vmatprep.subr.mxu0 0.0
    %72 = vmatpush1.msra.mxu0 %v55
    %73 = vmatprep.subr.mxu0 0.0
    %74 = vmatpush1.msra.mxu0 %v56
    %75 = vmatprep.subr.mxu0 0.0
    %76 = vmatpush1.msra.mxu0 %v57
    %77 = vmatprep.subr.mxu0 0.0
    %78 = vmatpush1.msra.mxu0 %v58
    %79 = vmatprep.subr.mxu0 0.0
    %80 = vmatpush1.msra.mxu0 0.0
    %81 = vmatprep.subr.mxu0 0.0
    %82 = vmatpush1.msra.mxu0 0.0
    %83 = vmatprep.subr.mxu0 0.0
    %84 = vmatpush1.msra.mxu0 0.0
    %85 = vmatprep.subr.mxu0 0.0
    %86 = vmatpush1.msra.mxu0 0.0
    %87 = vmatprep.subr.mxu0 0.0
    %88 = vmatpush1.msra.mxu0 0.0
    %89 = vmatprep.subr.mxu0 0.0
    %90 = vmatpush1.msra.mxu0 0.0
    %91 = vmatprep.subr.mxu0 0.0
    %92 = vmatpush1.msra.mxu0 0.0
    %93 = vmatprep.subr.mxu0 0.0
    %94 = vmatpush1.msra.mxu0 0.0
    %95 = vmatprep.subr.mxu0 0.0
    %96 = vmatpush1.msra.mxu0 0.0
    %97 = vmatprep.subr.mxu0 0.0
    %98 = vmatpush1.msra.mxu0 0.0
    %99 = vmatprep.subr.mxu0 0.0
    %100 = vmatpush1.msra.mxu0 0.0
    %101 = vmatprep.subr.mxu0 0.0
    %102 = vmatpush1.msra.mxu0 0.0
    %103 = vmatprep.subr.mxu0 0.0
    %104 = vmatpush1.msra.mxu0 0.0
    %105 = vmatprep.subr.mxu0 0.0
    %106 = vmatpush1.msra.mxu0 0.0
    %107 = vmatprep.subr.mxu0 0.0
    %108 = vmatpush1.msra.mxu0 0.0
    %109 = vmatprep.subr.mxu0 0.0
    %110 = vmatpush1.msra.mxu0 0.0
    %111 = vmatprep.subr.mxu0 0.0
    %112 = vmatpush1.msra.mxu0 0.0
    %113 = vmatprep.subr.mxu0 0.0
    %114 = vmatpush1.msra.mxu0 0.0
    %115 = vmatprep.subr.mxu0 0.0
    %116 = vmatpush1.msra.mxu0 0.0
    %117 = vmatprep.subr.mxu0 0.0
    %118 = vmatpush1.msra.mxu0 0.0
    %119 = vmatprep.subr.mxu0 0.0
    %120 = vmatpush1.msra.mxu0 0.0
    %121 = vmatprep.subr.mxu0 0.0
    %122 = vmatpush1.msra.mxu0 0.0
    %123 = vmatprep.subr.mxu0 0.0
    %124 = vmatpush1.msra.mxu0 0.0
    %125 = vmatprep.subr.mxu0 0.0
    %126 = vmatpush1.msra.mxu0 0.0
    %127 = vmatprep.subr.mxu0 0.0
    %128 = vmatpush1.msra.mxu0 0.0
    %129 = vmatprep.subr.mxu0 0.0
    %130 = vmatpush1.msra.mxu0 0.0
    %131 = vmatprep.subr.mxu0 0.0
    %132 = vmatpush1.msra.mxu0 0.0
    %133 = vmatprep.subr.mxu0 0.0
    %134 = vmatpush1.msra.mxu0 0.0
    %135 = vmatprep.mubr.f32.mxu0 0.0
    %136 = vmatmul.mubr.f32.gmra.mrb[0].mxu0 %v60
    %v137 = vpop.f32.mrb[0].mxu0
    %v138 = vadd.f32 0.0, %v137
    %v139 = vpop.f32.mrb[0].mxu0
    %140 = vmatprep.mubr.f32.mxu0 0.0
    %141 = vmatmul.mubr.f32.gmra.mrb[0].mxu0 %v63
    %v142 = vpop.f32.mrb[0].mxu0
    %v143 = vadd.f32 0.0, %v142
    %v144 = vpop.f32.mrb[0].mxu0
    %145 = vmatprep.mubr.f32.mxu0 0.0
    %146 = vmatmul.mubr.f32.gmra.mrb[0].mxu0 %v66
    %v147 = vpop.f32.mrb[0].mxu0
    %v148 = vadd.f32 0.0, %v147
    %v149 = vpop.f32.mrb[0].mxu0
    %150 = vmatprep.mubr.f32.mxu0 0.0
    %151 = vmatmul.mubr.f32.gmra.mrb[0].mxu0 %v69
    %v152 = vpop.f32.mrb[0].mxu0
    %v153 = vadd.f32 0.0, %v152
    %v154 = vpop.f32.mrb[0].mxu0
    %155 = vdwg.mxu0
    %v156 = vld [vmem:[%s3] sm:$0xff]
    %v157 = vld [vmem:[%s3 + $0x8] sm:$0xff]
    %v158 = vld [vmem:[%s3 + $0x10] sm:$0xff]
    %v159 = vld [vmem:[%s3 + $0x18] sm:$0xff]
    %160 = vmatprep.subr.mxu0 0.0
    %161 = vmatpush1.msra.mxu0 %v156
    %162 = vmatprep.subr.mxu0 0.0
    %163 = vmatpush1.msra.mxu0 %v157
    %164 = vmatprep.subr.mxu0 0.0
    %165 = vmatpush1.msra.mxu0 %v158
    %166 = vmatprep.subr.mxu0 0.0
    %167 = vmatpush1.msra.mxu0 %v159
    %168 = vmatprep.subr.mxu0 0.0
    %169 = vmatpush1.msra.mxu0 0.0
    %170 = vmatprep.subr.mxu0 0.0
    %171 = vmatpush1.msra.mxu0 0.0
    %172 = vmatprep.subr.mxu0 0.0
    %173 = vmatpush1.msra.mxu0 0.0
    %174 = vmatprep.subr.mxu0 0.0
    %175 = vmatpush1.msra.mxu0 0.0
    %176 = vmatprep.subr.mxu0 0.0
    %177 = vmatpush1.msra.mxu0 0.0
    %178 = vmatprep.subr.mxu0 0.0
    %179 = vmatpush1.msra.mxu0 0.0
    %180 = vmatprep.subr.mxu0 0.0
    %181 = vmatpush1.msra.mxu0 0.0
    %182 = vmatprep.subr.mxu0 0.0
    %183 = vmatpush1.msra.mxu0 0.0
    %184 = vmatprep.subr.mxu0 0.0
    %185 = vmatpush1.msra.mxu0 0.0
    %186 = vmatprep.subr.mxu0 0.0
    %187 = vmatpush1.msra.mxu0 0.0
    %188 = vmatprep.subr.mxu0 0.0
    %189 = vmatpush1.msra.mxu0 0.0
    %190 = vmatprep.subr.mxu0 0.0
    %191 = vmatpush1.msra.mxu0 0.0
    %192 = vmatprep.subr.mxu0 0.0
    %193 = vmatpush1.msra.mxu0 0.0
    %194 = vmatprep.subr.mxu0 0.0
    %195 = vmatpush1.msra.mxu0 0.0
    %196 = vmatprep.subr.mxu0 0.0
    %197 = vmatpush1.msra.mxu0 0.0
    %198 = vmatprep.subr.mxu0 0.0
    %199 = vmatpush1.msra.mxu0 0.0
    %200 = vmatprep.subr.mxu0 0.0
    %201 = vmatpush1.msra.mxu0 0.0
    %202 = vmatprep.subr.mxu0 0.0
    %203 = vmatpush1.msra.mxu0 0.0
    %204 = vmatprep.subr.mxu0 0.0
    %205 = vmatpush1.msra.mxu0 0.0
    %206 = vmatprep.subr.mxu0 0.0
    %207 = vmatpush1.msra.mxu0 0.0
    %208 = vmatprep.subr.mxu0 0.0
    %209 = vmatpush1.msra.mxu0 0.0
    %210 = vmatprep.subr.mxu0 0.0
    %211 = vmatpush1.msra.mxu0 0.0
    %212 = vmatprep.subr.mxu0 0.0
    %213 = vmatpush1.msra.mxu0 0.0
    %214 = vmatprep.subr.mxu0 0.0
    %215 = vmatpush1.msra.mxu0 0.0
    %216 = vmatprep.subr.mxu0 0.0
    %217 = vmatpush1.msra.mxu0 0.0
    %218 = vmatprep.subr.mxu0 0.0
    %219 = vmatpush1.msra.mxu0 0.0
    %220 = vmatprep.subr.mxu0 0.0
    %221 = vmatpush1.msra.mxu0 0.0
    %222 = vmatprep.subr.mxu0 0.0
    %223 = vmatpush1.msra.mxu0 0.0
    %224 = vmatprep.mubr.f32.mxu0 0.0
    %225 = vmatmul.mubr.f32.gmra.mrb[0].mxu0 %v60
    %v226 = vpop.f32.mrb[0].mxu0
    %v227 = vadd.f32 0.0, %v226
    %v228 = vpop.f32.mrb[0].mxu0
    %229 = vmatprep.mubr.f32.mxu0 0.0
    %230 = vmatmul.mubr.f32.gmra.mrb[0].mxu0 %v63
    %v231 = vpop.f32.mrb[0].mxu0
    %v232 = vadd.f32 0.0, %v231
    %v233 = vpop.f32.mrb[0].mxu0
    %234 = vmatprep.mubr.f32.mxu0 0.0
    %235 = vmatmul.mubr.f32.gmra.mrb[0].mxu0 %v66
    %v236 = vpop.f32.mrb[0].mxu0
    %v237 = vadd.f32 0.0, %v236
    %v238 = vpop.f32.mrb[0].mxu0
    %239 = vmatprep.mubr.f32.mxu0 0.0
    %240 = vmatmul.mubr.f32.gmra.mrb[0].mxu0 %v69
    %v241 = vpop.f32.mrb[0].mxu0
    %v242 = vadd.f32 0.0, %v241
    %v243 = vpop.f32.mrb[0].mxu0
    %244 = vdwg.mxu0
    %v245 = vsub.f32 0.0, %v227
    %v246 = vsub.f32 0.0, %v232
    %v247 = vsub.f32 0.0, %v237
    %v248 = vsub.f32 0.0, %v242
    %v249 = vld [vmem:[%s4] sm:$0xff]
    %v250 = vld [vmem:[%s4 + $0x8] sm:$0xff]
    %v251 = vld [vmem:[%s4 + $0x10] sm:$0xff]
    %v252 = vld [vmem:[%s4 + $0x18] sm:$0xff]
    %v253 = vld [vmem:[%s5] sm:$0xff]
    %v254 = vld [vmem:[%s5 + $0x8] sm:$0xff]
    %v255 = vld [vmem:[%s5 + $0x10] sm:$0xff]
    %v256 = vld [vmem:[%s5 + $0x18] sm:$0xff]
    %v258 = vsel %vm42, %v253, 0
    %v261 = vsel %vm42, %v254, 0
    %v264 = vsel %vm42, %v255, 0
    %v267 = vsel %vm42, %v256, 0
    %269 = vmatprep.subr.mxu0 0.0
    %270 = vmatpush1.msra.mxu0 %v245
    %271 = vmatprep.subr.mxu0 0.0
    %272 = vmatpush1.msra.mxu0 %v246
    %273 = vmatprep.subr.mxu0 0.0
    %274 = vmatpush1.msra.mxu0 %v247
    %275 = vmatprep.subr.mxu0 0.0
    %276 = vmatpush1.msra.mxu0 %v248
    %277 = vmatprep.subr.mxu0 0.0
    %278 = vmatpush1.msra.mxu0 0.0
    %279 = vmatprep.subr.mxu0 0.0
    %280 = vmatpush1.msra.mxu0 0.0
    %281 = vmatprep.subr.mxu0 0.0
    %282 = vmatpush1.msra.mxu0 0.0
    %283 = vmatprep.subr.mxu0 0.0
    %284 = vmatpush1.msra.mxu0 0.0
    %285 = vmatprep.subr.mxu0 0.0
    %286 = vmatpush1.msra.mxu0 0.0
    %287 = vmatprep.subr.mxu0 0.0
    %288 = vmatpush1.msra.mxu0 0.0
    %289 = vmatprep.subr.mxu0 0.0
    %290 = vmatpush1.msra.mxu0 0.0
    %291 = vmatprep.subr.mxu0 0.0
    %292 = vmatpush1.msra.mxu0 0.0
    %293 = vmatprep.subr.mxu0 0.0
    %294 = vmatpush1.msra.mxu0 0.0
    %295 = vmatprep.subr.mxu0 0.0
    %296 = vmatpush1.msra.mxu0 0.0
    %297 = vmatprep.subr.mxu0 0.0
    %298 = vmatpush1.msra.mxu0 0.0
    %299 = vmatprep.subr.mxu0 0.0
    %300 = vmatpush1.msra.mxu0 0.0
    %301 = vmatprep.subr.mxu0 0.0
    %302 = vmatpush1.msra.mxu0 0.0
    %303 = vmatprep.subr.mxu0 0.0
    %304 = vmatpush1.msra.mxu0 0.0
    %305 = vmatprep.subr.mxu0 0.0
    %306 = vmatpush1.msra.mxu0 0.0
    %307 = vmatprep.subr.mxu0 0.0
    %308 = vmatpush1.msra.mxu0 0.0
    %309 = vmatprep.subr.mxu0 0.0
    %310 = vmatpush1.msra.mxu0 0.0
    %311 = vmatprep.subr.mxu0 0.0
    %312 = vmatpush1.msra.mxu0 0.0
    %313 = vmatprep.subr.mxu0 0.0
    %314 = vmatpush1.msra.mxu0 0.0
    %315 = vmatprep.subr.mxu0 0.0
    %316 = vmatpush1.msra.mxu0 0.0
    %317 = vmatprep.subr.mxu0 0.0
    %318 = vmatpush1.msra.mxu0 0.0
    %319 = vmatprep.subr.mxu0 0.0
    %320 = vmatpush1.msra.mxu0 0.0
    %321 = vmatprep.subr.mxu0 0.0
    %322 = vmatpush1.msra.mxu0 0.0
    %323 = vmatprep.subr.mxu0 0.0
    %324 = vmatpush1.msra.mxu0 0.0
    %325 = vmatprep.subr.mxu0 0.0
    %326 = vmatpush1.msra.mxu0 0.0
    %327 = vmatprep.subr.mxu0 0.0
    %328 = vmatpush1.msra.mxu0 0.0
    %329 = vmatprep.subr.mxu0 0.0
    %330 = vmatpush1.msra.mxu0 0.0
    %331 = vmatprep.subr.mxu0 0.0
    %332 = vmatpush1.msra.mxu0 0.0
    %333 = vmatprep.mubr.f32.mxu0 0.0
    %334 = vmatmul.mubr.f32.gmra.mrb[0].mxu0 %v258
    %v335 = vpop.f32.mrb[0].mxu0
    %v336 = vadd.f32 0.0, %v335
    %v337 = vpop.f32.mrb[0].mxu0
    %338 = vmatprep.mubr.f32.mxu0 0.0
    %339 = vmatmul.mubr.f32.gmra.mrb[0].mxu0 %v261
    %v340 = vpop.f32.mrb[0].mxu0
    %v341 = vadd.f32 0.0, %v340
    %v342 = vpop.f32.mrb[0].mxu0
    %343 = vmatprep.mubr.f32.mxu0 0.0
    %344 = vmatmul.mubr.f32.gmra.mrb[0].mxu0 %v264
    %v345 = vpop.f32.mrb[0].mxu0
    %v346 = vadd.f32 0.0, %v345
    %v347 = vpop.f32.mrb[0].mxu0
    %348 = vmatprep.mubr.f32.mxu0 0.0
    %349 = vmatmul.mubr.f32.gmra.mrb[0].mxu0 %v267
    %v350 = vpop.f32.mrb[0].mxu0
    %v351 = vadd.f32 0.0, %v350
    %v352 = vpop.f32.mrb[0].mxu0
    %353 = vdwg.mxu0
    %v355 = vsel %vm42, %v249, 0
    %v358 = vsel %vm42, %v250, 0
    %v361 = vsel %vm42, %v251, 0
    %v364 = vsel %vm42, %v252, 0
    %366 = vmatprep.subr.mxu0 0.0
    %367 = vmatpush1.msra.mxu0 %v138
    %368 = vmatprep.subr.mxu0 0.0
    %369 = vmatpush1.msra.mxu0 %v143
    %370 = vmatprep.subr.mxu0 0.0
    %371 = vmatpush1.msra.mxu0 %v148
    %372 = vmatprep.subr.mxu0 0.0
    %373 = vmatpush1.msra.mxu0 %v153
    %374 = vmatprep.subr.mxu0 0.0
    %375 = vmatpush1.msra.mxu0 0.0
    %376 = vmatprep.subr.mxu0 0.0
    %377 = vmatpush1.msra.mxu0 0.0
    %378 = vmatprep.subr.mxu0 0.0
    %379 = vmatpush1.msra.mxu0 0.0
    %380 = vmatprep.subr.mxu0 0.0
    %381 = vmatpush1.msra.mxu0 0.0
    %382 = vmatprep.subr.mxu0 0.0
    %383 = vmatpush1.msra.mxu0 0.0
    %384 = vmatprep.subr.mxu0 0.0
    %385 = vmatpush1.msra.mxu0 0.0
    %386 = vmatprep.subr.mxu0 0.0
    %387 = vmatpush1.msra.mxu0 0.0
    %388 = vmatprep.subr.mxu0 0.0
    %389 = vmatpush1.msra.mxu0 0.0
    %390 = vmatprep.subr.mxu0 0.0
    %391 = vmatpush1.msra.mxu0 0.0
    %392 = vmatprep.subr.mxu0 0.0
    %393 = vmatpush1.msra.mxu0 0.0
    %394 = vmatprep.subr.mxu0 0.0
    %395 = vmatpush1.msra.mxu0 0.0
    %396 = vmatprep.subr.mxu0 0.0
    %397 = vmatpush1.msra.mxu0 0.0
    %398 = vmatprep.subr.mxu0 0.0
    %399 = vmatpush1.msra.mxu0 0.0
    %400 = vmatprep.subr.mxu0 0.0
    %401 = vmatpush1.msra.mxu0 0.0
    %402 = vmatprep.subr.mxu0 0.0
    %403 = vmatpush1.msra.mxu0 0.0
    %404 = vmatprep.subr.mxu0 0.0
    %405 = vmatpush1.msra.mxu0 0.0
    %406 = vmatprep.subr.mxu0 0.0
    %407 = vmatpush1.msra.mxu0 0.0
    %408 = vmatprep.subr.mxu0 0.0
    %409 = vmatpush1.msra.mxu0 0.0
    %410 = vmatprep.subr.mxu0 0.0
    %411 = vmatpush1.msra.mxu0 0.0
    %412 = vmatprep.subr.mxu0 0.0
    %413 = vmatpush1.msra.mxu0 0.0
    %414 = vmatprep.subr.mxu0 0.0
    %415 = vmatpush1.msra.mxu0 0.0
    %416 = vmatprep.subr.mxu0 0.0
    %417 = vmatpush1.msra.mxu0 0.0
    %418 = vmatprep.subr.mxu0 0.0
    %419 = vmatpush1.msra.mxu0 0.0
    %420 = vmatprep.subr.mxu0 0.0
    %421 = vmatpush1.msra.mxu0 0.0
    %422 = vmatprep.subr.mxu0 0.0
    %423 = vmatpush1.msra.mxu0 0.0
    %424 = vmatprep.subr.mxu0 0.0
    %425 = vmatpush1.msra.mxu0 0.0
    %426 = vmatprep.subr.mxu0 0.0
    %427 = vmatpush1.msra.mxu0 0.0
    %428 = vmatprep.subr.mxu0 0.0
    %429 = vmatpush1.msra.mxu0 0.0
    %430 = vmatprep.mubr.f32.mxu0 0.0
    %431 = vmatmul.mubr.f32.gmra.mrb[0].mxu0 %v355
    %v432 = vpop.f32.mrb[0].mxu0
    %v433 = vadd.f32 %v336, %v432
    %v434 = vpop.f32.mrb[0].mxu0
    %435 = vmatprep.mubr.f32.mxu0 0.0
    %436 = vmatmul.mubr.f32.gmra.mrb[0].mxu0 %v358
    %v437 = vpop.f32.mrb[0].mxu0
    %v438 = vadd.f32 %v341, %v437
    %v439 = vpop.f32.mrb[0].mxu0
    %440 = vmatprep.mubr.f32.mxu0 0.0
    %441 = vmatmul.mubr.f32.gmra.mrb[0].mxu0 %v361
    %v442 = vpop.f32.mrb[0].mxu0
    %v443 = vadd.f32 %v346, %v442
    %v444 = vpop.f32.mrb[0].mxu0
    %445 = vmatprep.mubr.f32.mxu0 0.0
    %446 = vmatmul.mubr.f32.gmra.mrb[0].mxu0 %v364
    %v447 = vpop.f32.mrb[0].mxu0
    %v448 = vadd.f32 %v351, %v447
    %v449 = vpop.f32.mrb[0].mxu0
    %450 = vdwg.mxu0
    %451 = vmatprep.subr.mxu0 0.0
    %452 = vmatpush1.msra.mxu0 %v245
    %453 = vmatprep.subr.mxu0 0.0
    %454 = vmatpush1.msra.mxu0 %v246
    %455 = vmatprep.subr.mxu0 0.0
    %456 = vmatpush1.msra.mxu0 %v247
    %457 = vmatprep.subr.mxu0 0.0
    %458 = vmatpush1.msra.mxu0 %v248
    %459 = vmatprep.subr.mxu0 0.0
    %460 = vmatpush1.msra.mxu0 0.0
    %461 = vmatprep.subr.mxu0 0.0
    %462 = vmatpush1.msra.mxu0 0.0
    %463 = vmatprep.subr.mxu0 0.0
    %464 = vmatpush1.msra.mxu0 0.0
    %465 = vmatprep.subr.mxu0 0.0
    %466 = vmatpush1.msra.mxu0 0.0
    %467 = vmatprep.subr.mxu0 0.0
    %468 = vmatpush1.msra.mxu0 0.0
    %469 = vmatprep.subr.mxu0 0.0
    %470 = vmatpush1.msra.mxu0 0.0
    %471 = vmatprep.subr.mxu0 0.0
    %472 = vmatpush1.msra.mxu0 0.0
    %473 = vmatprep.subr.mxu0 0.0
    %474 = vmatpush1.msra.mxu0 0.0
    %475 = vmatprep.subr.mxu0 0.0
    %476 = vmatpush1.msra.mxu0 0.0
    %477 = vmatprep.subr.mxu0 0.0
    %478 = vmatpush1.msra.mxu0 0.0
    %479 = vmatprep.subr.mxu0 0.0
    %480 = vmatpush1.msra.mxu0 0.0
    %481 = vmatprep.subr.mxu0 0.0
    %482 = vmatpush1.msra.mxu0 0.0
    %483 = vmatprep.subr.mxu0 0.0
    %484 = vmatpush1.msra.mxu0 0.0
    %485 = vmatprep.subr.mxu0 0.0
    %486 = vmatpush1.msra.mxu0 0.0
    %487 = vmatprep.subr.mxu0 0.0
    %488 = vmatpush1.msra.mxu0 0.0
    %489 = vmatprep.subr.mxu0 0.0
    %490 = vmatpush1.msra.mxu0 0.0
    %491 = vmatprep.subr.mxu0 0.0
    %492 = vmatpush1.msra.mxu0 0.0
    %493 = vmatprep.subr.mxu0 0.0
    %494 = vmatpush1.msra.mxu0 0.0
    %495 = vmatprep.subr.mxu0 0.0
    %496 = vmatpush1.msra.mxu0 0.0
    %497 = vmatprep.subr.mxu0 0.0
    %498 = vmatpush1.msra.mxu0 0.0
    %499 = vmatprep.subr.mxu0 0.0
    %500 = vmatpush1.msra.mxu0 0.0
    %501 = vmatprep.subr.mxu0 0.0
    %502 = vmatpush1.msra.mxu0 0.0
    %503 = vmatprep.subr.mxu0 0.0
    %504 = vmatpush1.msra.mxu0 0.0
    %505 = vmatprep.subr.mxu0 0.0
    %506 = vmatpush1.msra.mxu0 0.0
    %507 = vmatprep.subr.mxu0 0.0
    %508 = vmatpush1.msra.mxu0 0.0
    %509 = vmatprep.subr.mxu0 0.0
    %510 = vmatpush1.msra.mxu0 0.0
    %511 = vmatprep.subr.mxu0 0.0
    %512 = vmatpush1.msra.mxu0 0.0
    %513 = vmatprep.subr.mxu0 0.0
    %514 = vmatpush1.msra.mxu0 0.0
    %515 = vmatprep.mubr.f32.mxu0 0.0
    %516 = vmatmul.mubr.f32.gmra.mrb[0].mxu0 %v355
    %v517 = vpop.f32.mrb[0].mxu0
    %v518 = vadd.f32 0.0, %v517
    %v519 = vpop.f32.mrb[0].mxu0
    %520 = vmatprep.mubr.f32.mxu0 0.0
    %521 = vmatmul.mubr.f32.gmra.mrb[0].mxu0 %v358
    %v522 = vpop.f32.mrb[0].mxu0
    %v523 = vadd.f32 0.0, %v522
    %v524 = vpop.f32.mrb[0].mxu0
    %525 = vmatprep.mubr.f32.mxu0 0.0
    %526 = vmatmul.mubr.f32.gmra.mrb[0].mxu0 %v361
    %v527 = vpop.f32.mrb[0].mxu0
    %v528 = vadd.f32 0.0, %v527
    %v529 = vpop.f32.mrb[0].mxu0
    %530 = vmatprep.mubr.f32.mxu0 0.0
    %531 = vmatmul.mubr.f32.gmra.mrb[0].mxu0 %v364
    %v532 = vpop.f32.mrb[0].mxu0
    %v533 = vadd.f32 0.0, %v532
    %v534 = vpop.f32.mrb[0].mxu0
    %535 = vdwg.mxu0
    %536 = vmatprep.subr.mxu0 0.0
    %537 = vmatpush1.msra.mxu0 %v138
    %538 = vmatprep.subr.mxu0 0.0
    %539 = vmatpush1.msra.mxu0 %v143
    %540 = vmatprep.subr.mxu0 0.0
    %541 = vmatpush1.msra.mxu0 %v148
    %542 = vmatprep.subr.mxu0 0.0
    %543 = vmatpush1.msra.mxu0 %v153
    %544 = vmatprep.subr.mxu0 0.0
    %545 = vmatpush1.msra.mxu0 0.0
    %546 = vmatprep.subr.mxu0 0.0
    %547 = vmatpush1.msra.mxu0 0.0
    %548 = vmatprep.subr.mxu0 0.0
    %549 = vmatpush1.msra.mxu0 0.0
    %550 = vmatprep.subr.mxu0 0.0
    %551 = vmatpush1.msra.mxu0 0.0
    %552 = vmatprep.subr.mxu0 0.0
    %553 = vmatpush1.msra.mxu0 0.0
    %554 = vmatprep.subr.mxu0 0.0
    %555 = vmatpush1.msra.mxu0 0.0
    %556 = vmatprep.subr.mxu0 0.0
    %557 = vmatpush1.msra.mxu0 0.0
    %558 = vmatprep.subr.mxu0 0.0
    %559 = vmatpush1.msra.mxu0 0.0
    %560 = vmatprep.subr.mxu0 0.0
    %561 = vmatpush1.msra.mxu0 0.0
    %562 = vmatprep.subr.mxu0 0.0
    %563 = vmatpush1.msra.mxu0 0.0
    %564 = vmatprep.subr.mxu0 0.0
    %565 = vmatpush1.msra.mxu0 0.0
    %566 = vmatprep.subr.mxu0 0.0
    %567 = vmatpush1.msra.mxu0 0.0
    %568 = vmatprep.subr.mxu0 0.0
    %569 = vmatpush1.msra.mxu0 0.0
    %570 = vmatprep.subr.mxu0 0.0
    %571 = vmatpush1.msra.mxu0 0.0
    %572 = vmatprep.subr.mxu0 0.0
    %573 = vmatpush1.msra.mxu0 0.0
    %574 = vmatprep.subr.mxu0 0.0
    %575 = vmatpush1.msra.mxu0 0.0
    %576 = vmatprep.subr.mxu0 0.0
    %577 = vmatpush1.msra.mxu0 0.0
    %578 = vmatprep.subr.mxu0 0.0
    %579 = vmatpush1.msra.mxu0 0.0
    %580 = vmatprep.subr.mxu0 0.0
    %581 = vmatpush1.msra.mxu0 0.0
    %582 = vmatprep.subr.mxu0 0.0
    %583 = vmatpush1.msra.mxu0 0.0
    %584 = vmatprep.subr.mxu0 0.0
    %585 = vmatpush1.msra.mxu0 0.0
    %586 = vmatprep.subr.mxu0 0.0
    %587 = vmatpush1.msra.mxu0 0.0
    %588 = vmatprep.subr.mxu0 0.0
    %589 = vmatpush1.msra.mxu0 0.0
    %590 = vmatprep.subr.mxu0 0.0
    %591 = vmatpush1.msra.mxu0 0.0
    %592 = vmatprep.subr.mxu0 0.0
    %593 = vmatpush1.msra.mxu0 0.0
    %594 = vmatprep.subr.mxu0 0.0
    %595 = vmatpush1.msra.mxu0 0.0
    %596 = vmatprep.subr.mxu0 0.0
    %597 = vmatpush1.msra.mxu0 0.0
    %598 = vmatprep.subr.mxu0 0.0
    %599 = vmatpush1.msra.mxu0 0.0
    %600 = vmatprep.mubr.f32.mxu0 0.0
    %601 = vmatmul.mubr.f32.gmra.mrb[0].mxu0 %v258
    %v602 = vpop.f32.mrb[0].mxu0
    %v603 = vadd.f32 0.0, %v602
    %v604 = vpop.f32.mrb[0].mxu0
    %605 = vmatprep.mubr.f32.mxu0 0.0
    %606 = vmatmul.mubr.f32.gmra.mrb[0].mxu0 %v261
    %v607 = vpop.f32.mrb[0].mxu0
    %v608 = vadd.f32 0.0, %v607
    %v609 = vpop.f32.mrb[0].mxu0
    %610 = vmatprep.mubr.f32.mxu0 0.0
    %611 = vmatmul.mubr.f32.gmra.mrb[0].mxu0 %v264
    %v612 = vpop.f32.mrb[0].mxu0
    %v613 = vadd.f32 0.0, %v612
    %v614 = vpop.f32.mrb[0].mxu0
    %615 = vmatprep.mubr.f32.mxu0 0.0
    %616 = vmatmul.mubr.f32.gmra.mrb[0].mxu0 %v267
    %v617 = vpop.f32.mrb[0].mxu0
    %v618 = vadd.f32 0.0, %v617
    %v619 = vpop.f32.mrb[0].mxu0
    %620 = vdwg.mxu0
    %v621 = vsub.f32 %v518, %v603
    %v622 = vsub.f32 %v523, %v608
    %v623 = vsub.f32 %v528, %v613
    %v624 = vsub.f32 %v533, %v618
    %v625 = vmul.f32 %v433, %v433
    %v626 = vmul.f32 %v438, %v438
    %v627 = vmul.f32 %v443, %v443
    %v628 = vmul.f32 %v448, %v448
    %v629 = vmul.f32 %v621, %v621
    %v630 = vmul.f32 %v622, %v622
    %v631 = vmul.f32 %v623, %v623
    %v632 = vmul.f32 %v624, %v624
    %v633 = vadd.f32 %v625, %v629
    %v634 = vadd.f32 %v626, %v630
    %v635 = vadd.f32 %v627, %v631
    %v636 = vadd.f32 %v628, %v632
    %v637 = vrsqrt.pop %v633
    %v638 = vmul.f32 %v633, %v637
    %vm639 = vcmp.eq.f32.partialorder %v633, inf
    %v640 = vsel %vm639, %v633, %v638
    %vm641 = vcmp.eq.f32.partialorder %v633, 0.0
    %v642 = vand.u32 %v633, 2147483648
    %v643 = vsel %vm641, %v642, %v640
    %v644 = vrsqrt.pop %v634
    %v645 = vmul.f32 %v634, %v644
    %vm646 = vcmp.eq.f32.partialorder %v634, inf
    %v647 = vsel %vm646, %v634, %v645
    %vm648 = vcmp.eq.f32.partialorder %v634, 0.0
    %v649 = vand.u32 %v634, 2147483648
    %v650 = vsel %vm648, %v649, %v647
    %v651 = vrsqrt.pop %v635
    %v652 = vmul.f32 %v635, %v651
    %vm653 = vcmp.eq.f32.partialorder %v635, inf
    %v654 = vsel %vm653, %v635, %v652
    %vm655 = vcmp.eq.f32.partialorder %v635, 0.0
    %v656 = vand.u32 %v635, 2147483648
    %v657 = vsel %vm655, %v656, %v654
    %v658 = vrsqrt.pop %v636
    %v659 = vmul.f32 %v636, %v658
    %vm660 = vcmp.eq.f32.partialorder %v636, inf
    %v661 = vsel %vm660, %v636, %v659
    %vm662 = vcmp.eq.f32.partialorder %v636, 0.0
    %v663 = vand.u32 %v636, 2147483648
    %v664 = vsel %vm662, %v663, %v661
    %v665 = vsub.f32 %v643, %v657
    %v666 = vsub.f32 %v650, %v664
    %v667 = vand.u32 2147483647, %v665
    %v668 = vand.u32 2147483647, %v666
    %vm669 = vcmask 146432
    %v670 = vsel %vm669, %v667, 0.0
    %v671 = vsel %vm669, %v668, 0.0
    %v672 = vadd.f32 %v670, %v671
    %673 = vadd.xlane.f32.xlu0 %v672
    %v674 = vpop.xlane.xlu0 %673
    %v675 = vrot.slane %v674, 4
    %v676 = vadd.f32 %v674, %v675
    %v677 = vrot.slane %v676, 2
    %v678 = vadd.f32 %v676, %v677
    %v679 = vrot.slane %v678, 1
    %v680 = vadd.f32 %v678, %v679
    %s681 = vtos %v680
    %v682 = vmul.f32 %v34, %v34
    %v683 = vmul.f32 %v35, %v35
    %v684 = vmul.f32 %v36, %v36
    %v685 = vmul.f32 %v37, %v37
    %v686 = vmul.f32 %v34, %v36
    %v687 = vmul.f32 %v35, %v37
    %v688 = vld [vmem:[%s6] sm:$0xff]
    %v689 = vld [vmem:[%s6 + $0x8] sm:$0xff]
    %v690 = vld [vmem:[%s6 + $0x10] sm:$0xff]
    %v691 = vld [vmem:[%s6 + $0x18] sm:$0xff]
    %v693 = vsel %vm42, %v682, 0
    %v696 = vsel %vm42, %v683, 0
    %v699 = vsel %vm42, %v684, 0
    %v702 = vsel %vm42, %v685, 0
    %v705 = vsel %vm42, %v686, 0
    %v708 = vsel %vm42, %v687, 0
    %710 = vmatprep.subr.mxu0 0.0
    %711 = vmatpush1.msra.mxu0 %v688
    %712 = vmatprep.subr.mxu0 0.0
    %713 = vmatpush1.msra.mxu0 %v689
    %714 = vmatprep.subr.mxu0 0.0
    %715 = vmatpush1.msra.mxu0 %v690
    %716 = vmatprep.subr.mxu0 0.0
    %717 = vmatpush1.msra.mxu0 %v691
    %718 = vmatprep.subr.mxu0 0.0
    %719 = vmatpush1.msra.mxu0 0.0
    %720 = vmatprep.subr.mxu0 0.0
    %721 = vmatpush1.msra.mxu0 0.0
    %722 = vmatprep.subr.mxu0 0.0
    %723 = vmatpush1.msra.mxu0 0.0
    %724 = vmatprep.subr.mxu0 0.0
    %725 = vmatpush1.msra.mxu0 0.0
    %726 = vmatprep.subr.mxu0 0.0
    %727 = vmatpush1.msra.mxu0 0.0
    %728 = vmatprep.subr.mxu0 0.0
    %729 = vmatpush1.msra.mxu0 0.0
    %730 = vmatprep.subr.mxu0 0.0
    %731 = vmatpush1.msra.mxu0 0.0
    %732 = vmatprep.subr.mxu0 0.0
    %733 = vmatpush1.msra.mxu0 0.0
    %734 = vmatprep.subr.mxu0 0.0
    %735 = vmatpush1.msra.mxu0 0.0
    %736 = vmatprep.subr.mxu0 0.0
    %737 = vmatpush1.msra.mxu0 0.0
    %738 = vmatprep.subr.mxu0 0.0
    %739 = vmatpush1.msra.mxu0 0.0
    %740 = vmatprep.subr.mxu0 0.0
    %741 = vmatpush1.msra.mxu0 0.0
    %742 = vmatprep.subr.mxu0 0.0
    %743 = vmatpush1.msra.mxu0 0.0
    %744 = vmatprep.subr.mxu0 0.0
    %745 = vmatpush1.msra.mxu0 0.0
    %746 = vmatprep.subr.mxu0 0.0
    %747 = vmatpush1.msra.mxu0 0.0
    %748 = vmatprep.subr.mxu0 0.0
    %749 = vmatpush1.msra.mxu0 0.0
    %750 = vmatprep.subr.mxu0 0.0
    %751 = vmatpush1.msra.mxu0 0.0
    %752 = vmatprep.subr.mxu0 0.0
    %753 = vmatpush1.msra.mxu0 0.0
    %754 = vmatprep.subr.mxu0 0.0
    %755 = vmatpush1.msra.mxu0 0.0
    %756 = vmatprep.subr.mxu0 0.0
    %757 = vmatpush1.msra.mxu0 0.0
    %758 = vmatprep.subr.mxu0 0.0
    %759 = vmatpush1.msra.mxu0 0.0
    %760 = vmatprep.subr.mxu0 0.0
    %761 = vmatpush1.msra.mxu0 0.0
    %762 = vmatprep.subr.mxu0 0.0
    %763 = vmatpush1.msra.mxu0 0.0
    %764 = vmatprep.subr.mxu0 0.0
    %765 = vmatpush1.msra.mxu0 0.0
    %766 = vmatprep.subr.mxu0 0.0
    %767 = vmatpush1.msra.mxu0 0.0
    %768 = vmatprep.subr.mxu0 0.0
    %769 = vmatpush1.msra.mxu0 0.0
    %770 = vmatprep.subr.mxu0 0.0
    %771 = vmatpush1.msra.mxu0 0.0
    %772 = vmatprep.subr.mxu0 0.0
    %773 = vmatpush1.msra.mxu0 0.0
    %774 = vmatprep.mubr.f32.mxu0 0.0
    %775 = vmatmul.mubr.f32.gmra.mrb[0].mxu0 %v60
    %v776 = vpop.f32.mrb[0].mxu0
    %v777 = vadd.f32 0.0, %v776
    %v778 = vpop.f32.mrb[0].mxu0
    %779 = vmatprep.mubr.f32.mxu0 0.0
    %780 = vmatmul.mubr.f32.gmra.mrb[0].mxu0 %v63
    %v781 = vpop.f32.mrb[0].mxu0
    %v782 = vadd.f32 0.0, %v781
    %v783 = vpop.f32.mrb[0].mxu0
    %784 = vmatprep.mubr.f32.mxu0 0.0
    %785 = vmatmul.mubr.f32.gmra.mrb[0].mxu0 %v66
    %v786 = vpop.f32.mrb[0].mxu0
    %v787 = vadd.f32 0.0, %v786
    %v788 = vpop.f32.mrb[0].mxu0
    %789 = vmatprep.mubr.f32.mxu0 0.0
    %790 = vmatmul.mubr.f32.gmra.mrb[0].mxu0 %v69
    %v791 = vpop.f32.mrb[0].mxu0
    %v792 = vadd.f32 0.0, %v791
    %v793 = vpop.f32.mrb[0].mxu0
    %794 = vmatprep.mubr.f32.mxu0 0.0
    %795 = vmatmul.mubr.f32.gmra.mrb[0].mxu0 %v693
    %v796 = vpop.f32.mrb[0].mxu0
    %v797 = vadd.f32 0.0, %v796
    %v798 = vpop.f32.mrb[0].mxu0
    %799 = vmatprep.mubr.f32.mxu0 0.0
    %800 = vmatmul.mubr.f32.gmra.mrb[0].mxu0 %v696
    %v801 = vpop.f32.mrb[0].mxu0
    %v802 = vadd.f32 0.0, %v801
    %v803 = vpop.f32.mrb[0].mxu0
    %804 = vmatprep.mubr.f32.mxu0 0.0
    %805 = vmatmul.mubr.f32.gmra.mrb[0].mxu0 %v699
    %v806 = vpop.f32.mrb[0].mxu0
    %v807 = vadd.f32 0.0, %v806
    %v808 = vpop.f32.mrb[0].mxu0
    %809 = vmatprep.mubr.f32.mxu0 0.0
    %810 = vmatmul.mubr.f32.gmra.mrb[0].mxu0 %v702
    %v811 = vpop.f32.mrb[0].mxu0
    %v812 = vadd.f32 0.0, %v811
    %v813 = vpop.f32.mrb[0].mxu0
    %814 = vmatprep.mubr.f32.mxu0 0.0
    %815 = vmatmul.mubr.f32.gmra.mrb[0].mxu0 %v705
    %v816 = vpop.f32.mrb[0].mxu0
    %v817 = vadd.f32 0.0, %v816
    %v818 = vpop.f32.mrb[0].mxu0
    %819 = vmatprep.mubr.f32.mxu0 0.0
    %820 = vmatmul.mubr.f32.gmra.mrb[0].mxu0 %v708
    %v821 = vpop.f32.mrb[0].mxu0
    %v822 = vadd.f32 0.0, %v821
    %v823 = vpop.f32.mrb[0].mxu0
    %824 = vdwg.mxu0
    %v825 = vld [vmem:[%s7] sm:$0xff]
    %v826 = vld [vmem:[%s7 + $0x8] sm:$0xff]
    %v827 = vld [vmem:[%s7 + $0x10] sm:$0xff]
    %v828 = vld [vmem:[%s7 + $0x18] sm:$0xff]
    %v829 = vld [vmem:[%s7 + $0x20] sm:$0xff]
    %vm830 = vcmask 654336
    %v832 = vsel %vm830, %v825, 0
    %v835 = vsel %vm830, %v826, 0
    %v838 = vsel %vm830, %v827, 0
    %v841 = vsel %vm830, %v828, 0
    %v844 = vsel %vm830, %v829, 0
    %846 = vmatprep.subr.mxu0 0.0
    %847 = vmatpush1.msra.mxu0 %v777
    %848 = vmatprep.subr.mxu0 0.0
    %849 = vmatpush1.msra.mxu0 %v782
    %850 = vmatprep.subr.mxu0 0.0
    %851 = vmatpush1.msra.mxu0 %v787
    %852 = vmatprep.subr.mxu0 0.0
    %853 = vmatpush1.msra.mxu0 %v792
    %854 = vmatprep.subr.mxu0 0.0
    %855 = vmatpush1.msra.mxu0 %v797
    %856 = vmatprep.subr.mxu0 0.0
    %857 = vmatpush1.msra.mxu0 %v802
    %858 = vmatprep.subr.mxu0 0.0
    %859 = vmatpush1.msra.mxu0 %v807
    %860 = vmatprep.subr.mxu0 0.0
    %861 = vmatpush1.msra.mxu0 %v812
    %862 = vmatprep.subr.mxu0 0.0
    %863 = vmatpush1.msra.mxu0 %v817
    %864 = vmatprep.subr.mxu0 0.0
    %865 = vmatpush1.msra.mxu0 %v822
    %866 = vmatprep.subr.mxu0 0.0
    %867 = vmatpush1.msra.mxu0 0.0
    %868 = vmatprep.subr.mxu0 0.0
    %869 = vmatpush1.msra.mxu0 0.0
    %870 = vmatprep.subr.mxu0 0.0
    %871 = vmatpush1.msra.mxu0 0.0
    %872 = vmatprep.subr.mxu0 0.0
    %873 = vmatpush1.msra.mxu0 0.0
    %874 = vmatprep.subr.mxu0 0.0
    %875 = vmatpush1.msra.mxu0 0.0
    %876 = vmatprep.subr.mxu0 0.0
    %877 = vmatpush1.msra.mxu0 0.0
    %878 = vmatprep.subr.mxu0 0.0
    %879 = vmatpush1.msra.mxu0 0.0
    %880 = vmatprep.subr.mxu0 0.0
    %881 = vmatpush1.msra.mxu0 0.0
    %882 = vmatprep.subr.mxu0 0.0
    %883 = vmatpush1.msra.mxu0 0.0
    %884 = vmatprep.subr.mxu0 0.0
    %885 = vmatpush1.msra.mxu0 0.0
    %886 = vmatprep.subr.mxu0 0.0
    %887 = vmatpush1.msra.mxu0 0.0
    %888 = vmatprep.subr.mxu0 0.0
    %889 = vmatpush1.msra.mxu0 0.0
    %890 = vmatprep.subr.mxu0 0.0
    %891 = vmatpush1.msra.mxu0 0.0
    %892 = vmatprep.subr.mxu0 0.0
    %893 = vmatpush1.msra.mxu0 0.0
    %894 = vmatprep.subr.mxu0 0.0
    %895 = vmatpush1.msra.mxu0 0.0
    %896 = vmatprep.subr.mxu0 0.0
    %897 = vmatpush1.msra.mxu0 0.0
    %898 = vmatprep.subr.mxu0 0.0
    %899 = vmatpush1.msra.mxu0 0.0
    %900 = vmatprep.subr.mxu0 0.0
    %901 = vmatpush1.msra.mxu0 0.0
    %902 = vmatprep.subr.mxu0 0.0
    %903 = vmatpush1.msra.mxu0 0.0
    %904 = vmatprep.subr.mxu0 0.0
    %905 = vmatpush1.msra.mxu0 0.0
    %906 = vmatprep.subr.mxu0 0.0
    %907 = vmatpush1.msra.mxu0 0.0
    %908 = vmatprep.subr.mxu0 0.0
    %909 = vmatpush1.msra.mxu0 0.0
    %910 = vmatprep.mubr.f32.mxu0 0.0
    %911 = vmatmul.mubr.f32.gmra.mrb[0].mxu0 %v832
    %v912 = vpop.f32.mrb[0].mxu0
    %v913 = vadd.f32 0.0, %v912
    %v914 = vpop.f32.mrb[0].mxu0
    %915 = vmatprep.mubr.f32.mxu0 0.0
    %916 = vmatmul.mubr.f32.gmra.mrb[0].mxu0 %v835
    %v917 = vpop.f32.mrb[0].mxu0
    %v918 = vadd.f32 0.0, %v917
    %v919 = vpop.f32.mrb[0].mxu0
    %920 = vmatprep.mubr.f32.mxu0 0.0
    %921 = vmatmul.mubr.f32.gmra.mrb[0].mxu0 %v838
    %v922 = vpop.f32.mrb[0].mxu0
    %v923 = vadd.f32 0.0, %v922
    %v924 = vpop.f32.mrb[0].mxu0
    %925 = vmatprep.mubr.f32.mxu0 0.0
    %926 = vmatmul.mubr.f32.gmra.mrb[0].mxu0 %v841
    %v927 = vpop.f32.mrb[0].mxu0
    %v928 = vadd.f32 0.0, %v927
    %v929 = vpop.f32.mrb[0].mxu0
    %930 = vmatprep.mubr.f32.mxu0 0.0
    %931 = vmatmul.mubr.f32.gmra.mrb[0].mxu0 %v844
    %v932 = vpop.f32.mrb[0].mxu0
    %v933 = vadd.f32 0.0, %v932
    %v934 = vpop.f32.mrb[0].mxu0
    %935 = vdwg.mxu0
    %v936 = vmul.f32 %v913, %v913
    %v937 = vmul.f32 %v918, %v918
    %v938 = vmul.f32 %v913, %v918
    %v939 = vsub.f32 %v923, %v936
    %v940 = vsub.f32 %v928, %v937
    %v941 = vsub.f32 %v933, %v938
    %v942 = vmul.f32 %v938, 2.0
    %v943 = vadd.f32 %v942, 0.0001
    %v944 = vmul.f32 %v941, 2.0
    %v945 = vadd.f32 %v944, 0.0009
    %v946 = vmul.f32 %v943, %v945
    %v947 = vadd.f32 %v936, %v937
    %v948 = vadd.f32 %v947, 0.0001
    %v949 = vadd.f32 %v939, %v940
    %v950 = vadd.f32 %v949, 0.0009
    %v951 = vmul.f32 %v948, %v950
    %v952 = vrcp.pop %v951
    %v953 = vmul.f32 %v946, %v952
    %v954 = vlaneseq
    %v955 = vshrl.u32 %v954, 7
    %vm956 = vcmp.lt.s32.totalorder %v955, 6
    %v957 = vsel %vm956, %v953, 0.0
    %vm958 = vcmask 97280
    %v959 = vsel %vm958, %v957, 0.0
    %960 = vadd.xlane.f32.xlu0 %v959
    %v961 = vpop.xlane.xlu0 %960
    %v962 = vrot.slane %v961, 4
    %v963 = vadd.f32 %v961, %v962
    %v964 = vrot.slane %v963, 2
    %v965 = vadd.f32 %v963, %v964
    %v966 = vrot.slane %v965, 1
    %v967 = vadd.f32 %v965, %v966
    %s968 = vtos %v967
    %v969 = vstv %s54
    %vm970 = vcmask 0
    %971 = vst.msk [vmem:[#allocation2] sm:$0x1] %vm970, %v969
    %v972 = vstv %s681
    %973 = vst.msk [vmem:[#allocation4] sm:$0x1] %vm970, %v972
    %v974 = vstv %s968
    %975 = vst.msk [vmem:[#allocation6] sm:$0x1] %vm970, %v974
    // Predicated region
    $region34: #{combined_loss.1} parent=1 // pred_check
      _
    $region35: #{combined_loss.1} parent=1 // pred_check_branch
      %977 = sbr.rel (0) target = $region37
    $region36: #{combined_loss.1} parent=1 // pred_region
      %s979 = ssub.s32 16, 16
      %980 = vsyncadd [#allocation3], %s979
      %s982 = sshll.u32 [#allocation2], 4
      %s983 = int_to_ptr.vmem [resolvable:$true] %s982
      %985 = dma.vmem_to_hbm [thread:$0]  %s983, 16, %s8, [#allocation3]
    $region37: #{combined_loss.1} parent=1 // pred_fallthru
      _
    // Predicated region
    $region38: #{combined_loss.1} parent=1 // pred_check
      _
    $region39: #{combined_loss.1} parent=1 // pred_check_branch
      %987 = sbr.rel (0) target = $region41
    $region40: #{combined_loss.1} parent=1 // pred_region
      %s989 = ssub.s32 16, 16
      %990 = vsyncadd [#allocation5], %s989
      %s992 = sshll.u32 [#allocation4], 4
      %s993 = int_to_ptr.vmem [resolvable:$true] %s992
      %995 = dma.vmem_to_hbm [thread:$0]  %s993, 16, %s9, [#allocation5]
    $region41: #{combined_loss.1} parent=1 // pred_fallthru
      _
    // Predicated region
    $region42: #{combined_loss.1} parent=1 // pred_check
      _
    $region43: #{combined_loss.1} parent=1 // pred_check_branch
      %997 = sbr.rel (0) target = $region45
    $region44: #{combined_loss.1} parent=1 // pred_region
      %s999 = ssub.s32 16, 16
      %1000 = vsyncadd [#allocation5], %s999
      %s1002 = sshll.u32 [#allocation6], 4
      %s1003 = int_to_ptr.vmem [resolvable:$true] %s1002
      %1005 = dma.vmem_to_hbm [thread:$0]  %s1003, 16, %s10, [#allocation5]
    $region45: #{combined_loss.1} parent=1 // pred_fallthru
      _
    // Predicated region
    $region46: #{combined_loss.1} parent=1 // pred_check
      _
    $region47: #{combined_loss.1} parent=1 // pred_check_branch
      %1007 = sbr.rel (0) target = $region49
    $region48: #{combined_loss.1} parent=1 // pred_region
      %1008 = dma.done [#allocation3], 16
    $region49: #{combined_loss.1} parent=1 // pred_fallthru
      _
    // Predicated region
    $region50: #{combined_loss.1} parent=1 // pred_check
      _
    $region51: #{combined_loss.1} parent=1 // pred_check_branch
      %1010 = sbr.rel (0) target = $region53
    $region52: #{combined_loss.1} parent=1 // pred_region
      %1011 = dma.done [#allocation5], 16
    $region53: #{combined_loss.1} parent=1 // pred_fallthru
      _
    // Predicated region
    $region54: #{combined_loss.1} parent=1 // pred_check
      _
    $region55: #{combined_loss.1} parent=1 // pred_check_branch
      %1013 = sbr.rel (0) target = $region57
    $region56: #{combined_loss.1} parent=1 // pred_region
      %1014 = dma.done [#allocation5], 16
    $region57: #{combined_loss.1} parent=1 // pred_fallthru
      _
    %1015 = vsyncpa [#allocation3], 1
    %1016 = vsyncpa [#allocation5], 1

</llo_original>
